<compile_context>
chip_gen: v5e
topology: v5e:2x2
jax: 0.10.0
libtpu: 0.0.40
codegen_flags: <defaults>
</compile_context>

<pallas_src>
import jax
import jax.numpy as jnp
from jax.experimental import pallas as pl
from jax.experimental.pallas import tpu as pltpu

PACK = 8  # batch rows folded into lanes; 8*G*O = 128 for this config (lane-dense out)


def _fused_group_mlp_kernel(x_ref, e_ref, w1x_ref, w1e_ref, b1_ref,
                            w2_ref, b2_ref, o_ref):
    # x_ref : (bt, P*G*Dx)     e_ref : (bt, P*G*2)
    # w1x_ref: (P*G*Dx, P*G*H) w1e_ref: (P*G*2, P*G*H)   (block-diag, VMEM-resident)
    # b1_ref : (1, P*G*H)      w2_ref : (P*G*H, P*G*O)   b2_ref: (1, P*G*O)
    # o_ref  : (bt, P*G*O)     -- 128 lanes => dense stores / dense HBM writeback
    h = jnp.dot(x_ref[...], w1x_ref[...], preferred_element_type=jnp.float32)
    h = h + jnp.dot(e_ref[...], w1e_ref[...], preferred_element_type=jnp.float32)
    h = jnp.tanh(h + b1_ref[...])                                    # (bt, P*G*H)
    out = jnp.dot(h, w2_ref[...], preferred_element_type=jnp.float32) + b2_ref[...]
    o_ref[...] = out.astype(o_ref.dtype)


def _block_diag(blocks):
    """blocks: (G, r, c) -> block-diagonal (G*r, G*c)."""
    G, r, c = blocks.shape
    eye = jnp.eye(G, dtype=blocks.dtype)
    return jnp.einsum("grc,gk->grkc", blocks, eye).reshape(G * r, G * c)


def pack_params(params, pack=PACK):
    """One-time transform of per-group weights into fused (group x batch-octet)
    block-diagonal form."""
    pos_emb = params["pos_emb"].astype(jnp.float32)   # (3G, 2)
    w1 = params["w1"].astype(jnp.float32)             # (G, H, Din)
    b1 = params["b1"].astype(jnp.float32)             # (G, H)
    w2 = params["w2"].astype(jnp.float32)             # (G, O, H)
    b2 = params["b2"].astype(jnp.float32)             # (G, O)

    G, H, Din = w1.shape
    O = w2.shape[1]
    Dx = Din - 2

    eye_p = jnp.eye(pack, dtype=jnp.float32)
    # Pre-transpose so the kernel does x @ W (no in-kernel .T), split W1 into its
    # x-columns and embedding-columns (kills the HBM concat), block-diag over groups,
    # then block-diag again over the 8-row batch octet (kron with I_8).
    w1x_bd = jnp.kron(eye_p, _block_diag(jnp.transpose(w1[:, :, :Dx], (0, 2, 1))))  # (P*G*Dx, P*G*H)
    w1e_bd = jnp.kron(eye_p, _block_diag(jnp.transpose(w1[:, :, Dx:], (0, 2, 1))))  # (P*G*2,  P*G*H)
    w2_bd = jnp.kron(eye_p, _block_diag(jnp.transpose(w2, (0, 2, 1))))              # (P*G*H,  P*G*O)

    return {
        "pos_emb": pos_emb,
        "w1x_bd": w1x_bd,
        "w1e_bd": w1e_bd,
        "b1": jnp.tile(b1.reshape(1, G * H), (1, pack)),   # (1, P*G*H)
        "w2_bd": w2_bd,
        "b2": jnp.tile(b2.reshape(1, G * O), (1, pack)),   # (1, P*G*O)
        "dims": (G, Dx, H, O),
        "pack": pack,
    }


def conv_fully_base_forward(x, x_cate, packed):
    """x: (B, G, input_dim) f32, x_cate: (B, G) int32 -> (B, G, output_dim) f32."""
    G, Dx, H, O = packed["dims"]
    P = packed["pack"]
    B = x.shape[0]

    # Embedding gather stays in plain JAX (tiny (3G,2) table).
    emb = jnp.take(packed["pos_emb"], x_cate, axis=0)                 # (B, G, 2)
    xf = x.reshape(B, G * Dx).astype(jnp.float32)                     # (B, G*Dx)
    ef = emb.reshape(B, G * 2).astype(jnp.float32)                    # (B, G*2)

    # Pad only to a multiple of P (<= P-1 zero rows, only if B % P != 0).  The tile
    # itself is handled as a ragged last grid block by Pallas (no pad to Bt).
    B8 = ((B + P - 1) // P) * P
    if B8 != B:
        xf = jnp.pad(xf, ((0, B8 - B), (0, 0)))
        ef = jnp.pad(ef, ((0, B8 - B), (0, 0)))
    rows = B8 // P
    # Free row-major reshapes: fold 8 batch rows into the lane dimension.
    xp = xf.reshape(rows, P * G * Dx)                                 # (rows, P*G*Dx)
    ep = ef.reshape(rows, P * G * 2)                                  # (rows, P*G*2)

    # Batch tile (in packed rows): multiple of 8 sublanes, >= 2 grid steps whenever
    # possible (v7x: 2 TensorCores share the "parallel" axis), capped at 128 packed
    # rows (= 1024 batch rows) so the live f32 hidden block stays ~512 KiB.
    if rows <= 8:
        bt = rows                     # single full-extent block
    else:
        bt = min(128, ((pl.cdiv(rows, 2) + 7) // 8) * 8)
    nb = pl.cdiv(rows, bt)

    outp = pl.pallas_call(
        _fused_group_mlp_kernel,
        out_shape=jax.ShapeDtypeStruct((rows, P * G * O), jnp.float32),
        grid=(nb,),
        in_specs=[
            pl.BlockSpec((bt, P * G * Dx), lambda i: (i, 0)),
            pl.BlockSpec((bt, P * G * 2), lambda i: (i, 0)),
            # Weights/biases: full-array blocks, constant index_map -> VMEM-resident
            # across the whole grid (no per-step re-DMA).
            pl.BlockSpec((P * G * Dx, P * G * H), lambda i: (0, 0)),
            pl.BlockSpec((P * G * 2, P * G * H), lambda i: (0, 0)),
            pl.BlockSpec((1, P * G * H), lambda i: (0, 0)),
            pl.BlockSpec((P * G * H, P * G * O), lambda i: (0, 0)),
            pl.BlockSpec((1, P * G * O), lambda i: (0, 0)),
        ],
        out_specs=pl.BlockSpec((bt, P * G * O), lambda i: (i, 0)),
        compiler_params=pltpu.CompilerParams(dimension_semantics=("parallel",)),
    )(xp, ep, packed["w1x_bd"], packed["w1e_bd"], packed["b1"],
      packed["w2_bd"], packed["b2"])

    # Row-major unpack is free; slice off the (at most P-1) padded rows.
    return outp.reshape(B8, G * O)[:B].reshape(B, G, O)


def _reference_forward(x, x_cate, params):
    """Pure-JAX reference matching the PyTorch module."""
    emb = jnp.take(params["pos_emb"], x_cate, axis=0)
    xf = jnp.concatenate([x, emb], axis=-1)                                  # (B, G, Din)
    h = jnp.tanh(jnp.einsum("bgd,ghd->bgh", xf, params["w1"]) + params["b1"][None])
    out = jnp.einsum("bgh,goh->bgo", h, params["w2"]) + params["b2"][None]
    return out


def init_params(key, input_dim, hidden_dim, output_dim, group_size):
    Din = input_dim + 2
    k = jax.random.split(key, 5)
    # Deterministic synthetic init (shapes match nn.Embedding / grouped Conv1d k=1).
    pos_emb = jax.random.normal(k[0], (group_size * 3, 2), jnp.float32)
    w1 = jax.random.normal(k[1], (group_size, hidden_dim, Din), jnp.float32) * (1.0 / Din ** 0.5)
    b1 = jax.random.normal(k[2], (group_size, hidden_dim), jnp.float32) * 0.01
    w2 = jax.random.normal(k[3], (group_size, output_dim, hidden_dim), jnp.float32) * (1.0 / hidden_dim ** 0.5)
    b2 = jax.random.normal(k[4], (group_size, output_dim), jnp.float32) * 0.01
    return {"pos_emb": pos_emb, "w1": w1, "b1": b1, "w2": w2, "b2": b2}


if __name__ == "__main__":
    # TODO(synk): BaseLSTMModel / Prescriptor.forward (LSTM recurrences) are not
    # kernelized here; only the ConvFullyBase `after_forward` path is implemented.
    G = 4
    input_dim, hidden_dim, output_dim = 6, 32, 4   # Din = 8, 8*G*O = 128 (lane-dense out)

    key = jax.random.PRNGKey(0)
    kx, kc, kp, kx2, kc2 = jax.random.split(key, 5)
    params = init_params(kp, input_dim, hidden_dim, output_dim, group_size=G)
    packed = pack_params(params)   # one-time weight repack (block-diag + octet fold)

    # Small case (single block): B=2.
    B = 2
    x = jax.random.normal(kx, (B, G, input_dim), jnp.float32)
    x_cate = jax.random.randint(kc, (B, G), 0, G * 3, jnp.int32)
    out = jax.block_until_ready(conv_fully_base_forward(x, x_cate, packed))
    ref = jax.block_until_ready(_reference_forward(x, x_cate, params))
    assert out.shape == (B, G, output_dim)
    assert jnp.allclose(out, ref, atol=1e-4, rtol=1e-4), "mismatch vs reference (B=2)"

    # Larger case exercising padding (B % 8 != 0), >=2 grid steps, ragged last block.
    B2 = 100
    x2 = jax.random.normal(kx2, (B2, G, input_dim), jnp.float32)
    x_cate2 = jax.random.randint(kc2, (B2, G), 0, G * 3, jnp.int32)
    out2 = jax.block_until_ready(conv_fully_base_forward(x2, x_cate2, packed))
    ref2 = jax.block_until_ready(_reference_forward(x2, x_cate2, params))
    assert out2.shape == (B2, G, output_dim)
    assert jnp.allclose(out2, ref2, atol=1e-4, rtol=1e-4), "mismatch vs reference (B=100)"

    print("KERNEL_OK")
</pallas_src>

<mosaic_0001>
module attributes {stable_mosaic.version = 11 : i64} {
  func.func @_fused_group_mlp_kernel(%arg0: i32, %arg1: memref<1x192xf32, #tpu.memory_space<vmem>>, %arg2: memref<1x64xf32, #tpu.memory_space<vmem>>, %arg3: memref<192x1024xf32, #tpu.memory_space<vmem>>, %arg4: memref<64x1024xf32, #tpu.memory_space<vmem>>, %arg5: memref<1x1024xf32, #tpu.memory_space<vmem>>, %arg6: memref<1024x128xf32, #tpu.memory_space<vmem>>, %arg7: memref<1x128xf32, #tpu.memory_space<vmem>>, %arg8: memref<1x128xf32, #tpu.memory_space<vmem>>) attributes {dimension_semantics = [#tpu.dimension_semantics<parallel>], iteration_bounds = array<i64: 1>, scalar_prefetch = 0 : i64, scratch_operands = 0 : i64, tpu.core_type = #tpu.core_type<tc>, window_params = [{transform_indices = @transform_0, window_bounds = array<i64: 1, 192>}, {transform_indices = @transform_1, window_bounds = array<i64: 1, 64>}, {pipeline_mode = #tpu.pipeline_mode<synchronous>, transform_indices = @transform_2, window_bounds = array<i64: 192, 1024>}, {pipeline_mode = #tpu.pipeline_mode<synchronous>, transform_indices = @transform_3, window_bounds = array<i64: 64, 1024>}, {pipeline_mode = #tpu.pipeline_mode<synchronous>, transform_indices = @transform_4, window_bounds = array<i64: 1, 1024>}, {pipeline_mode = #tpu.pipeline_mode<synchronous>, transform_indices = @transform_5, window_bounds = array<i64: 1024, 128>}, {pipeline_mode = #tpu.pipeline_mode<synchronous>, transform_indices = @transform_6, window_bounds = array<i64: 1, 128>}, {transform_indices = @transform_7, window_bounds = array<i64: 1, 128>}]} {
    %c0 = arith.constant 0 : index
    %c0_0 = arith.constant 0 : index
    %0 = vector.load %arg1[%c0, %c0_0] : memref<1x192xf32, #tpu.memory_space<vmem>>, vector<1x192xf32>
    %c0_1 = arith.constant 0 : index
    %c0_2 = arith.constant 0 : index
    %1 = vector.load %arg3[%c0_1, %c0_2] : memref<192x1024xf32, #tpu.memory_space<vmem>>, vector<192x1024xf32>
    %cst = arith.constant dense<0.000000e+00> : vector<1x1024xf32>
    %2 = tpu.matmul %0, %1, %cst {dimension_numbers = #tpu.dot_dimension_numbers<[1], [0], [0], [1], [0, 0, 1, 1], [], []>} : vector<1x192xf32>, vector<192x1024xf32>, vector<1x1024xf32> -> vector<1x1024xf32>
    %c0_3 = arith.constant 0 : index
    %c0_4 = arith.constant 0 : index
    %3 = vector.load %arg2[%c0_3, %c0_4] : memref<1x64xf32, #tpu.memory_space<vmem>>, vector<1x64xf32>
    %c0_5 = arith.constant 0 : index
    %c0_6 = arith.constant 0 : index
    %4 = vector.load %arg4[%c0_5, %c0_6] : memref<64x1024xf32, #tpu.memory_space<vmem>>, vector<64x1024xf32>
    %cst_7 = arith.constant dense<0.000000e+00> : vector<1x1024xf32>
    %5 = tpu.matmul %3, %4, %cst_7 {dimension_numbers = #tpu.dot_dimension_numbers<[1], [0], [0], [1], [0, 0, 1, 1], [], []>} : vector<1x64xf32>, vector<64x1024xf32>, vector<1x1024xf32> -> vector<1x1024xf32>
    %6 = arith.addf %2, %5 : vector<1x1024xf32>
    %c0_8 = arith.constant 0 : index
    %c0_9 = arith.constant 0 : index
    %7 = vector.load %arg5[%c0_8, %c0_9] : memref<1x1024xf32, #tpu.memory_space<vmem>>, vector<1x1024xf32>
    %8 = arith.addf %6, %7 : vector<1x1024xf32>
    %9 = math.tanh %8 : vector<1x1024xf32>
    %c0_10 = arith.constant 0 : index
    %c0_11 = arith.constant 0 : index
    %10 = vector.load %arg6[%c0_10, %c0_11] : memref<1024x128xf32, #tpu.memory_space<vmem>>, vector<1024x128xf32>
    %cst_12 = arith.constant dense<0.000000e+00> : vector<1x128xf32>
    %11 = tpu.matmul %9, %10, %cst_12 {dimension_numbers = #tpu.dot_dimension_numbers<[1], [0], [0], [1], [0, 0, 1, 1], [], []>} : vector<1x1024xf32>, vector<1024x128xf32>, vector<1x128xf32> -> vector<1x128xf32>
    %c0_13 = arith.constant 0 : index
    %c0_14 = arith.constant 0 : index
    %12 = vector.load %arg7[%c0_13, %c0_14] : memref<1x128xf32, #tpu.memory_space<vmem>>, vector<1x128xf32>
    %13 = arith.addf %11, %12 : vector<1x128xf32>
    %c0_15 = arith.constant 0 : index
    %c0_16 = arith.constant 0 : index
    %14 = vector.load %arg8[%c0_15, %c0_16] : memref<1x128xf32, #tpu.memory_space<vmem>>, vector<1x128xf32>
    tpu.vector_store %arg8[%c0_15, %c0_16], %13 {strides = array<i32>} : memref<1x128xf32, #tpu.memory_space<vmem>>, vector<1x128xf32>,
    return
  }
  func.func @transform_0(%arg0: i32) -> (i32, i32) {
    %c0_i32 = arith.constant 0 : i32
    %c0_i32_0 = arith.constant 0 : i32
    return %arg0, %c0_i32 : i32, i32
  }
  func.func @transform_1(%arg0: i32) -> (i32, i32) {
    %c0_i32 = arith.constant 0 : i32
    %c0_i32_0 = arith.constant 0 : i32
    return %arg0, %c0_i32 : i32, i32
  }
  func.func @transform_2(%arg0: i32) -> (i32, i32) {
    %c0_i32 = arith.constant 0 : i32
    %c0_i32_0 = arith.constant 0 : i32
    %c0_i32_1 = arith.constant 0 : i32
    return %c0_i32, %c0_i32_0 : i32, i32
  }
  func.func @transform_3(%arg0: i32) -> (i32, i32) {
    %c0_i32 = arith.constant 0 : i32
    %c0_i32_0 = arith.constant 0 : i32
    %c0_i32_1 = arith.constant 0 : i32
    return %c0_i32, %c0_i32_0 : i32, i32
  }
  func.func @transform_4(%arg0: i32) -> (i32, i32) {
    %c0_i32 = arith.constant 0 : i32
    %c0_i32_0 = arith.constant 0 : i32
    %c0_i32_1 = arith.constant 0 : i32
    return %c0_i32, %c0_i32_0 : i32, i32
  }
  func.func @transform_5(%arg0: i32) -> (i32, i32) {
    %c0_i32 = arith.constant 0 : i32
    %c0_i32_0 = arith.constant 0 : i32
    %c0_i32_1 = arith.constant 0 : i32
    return %c0_i32, %c0_i32_0 : i32, i32
  }
  func.func @transform_6(%arg0: i32) -> (i32, i32) {
    %c0_i32 = arith.constant 0 : i32
    %c0_i32_0 = arith.constant 0 : i32
    %c0_i32_1 = arith.constant 0 : i32
    return %c0_i32, %c0_i32_0 : i32, i32
  }
  func.func @transform_7(%arg0: i32) -> (i32, i32) {
    %c0_i32 = arith.constant 0 : i32
    %c0_i32_0 = arith.constant 0 : i32
    return %arg0, %c0_i32 : i32, i32
  }
}

</mosaic_0001>

<llo_original>
// kernel: tpu_custom_call.1
$region0: #{tpu_custom_call.1}
  #allocation0 [shape = 'u32[]', space=smem, size = 0x4, offset = 0x4, fixed_abs, tag = 'smem constant byte address 0x4 - core index']
  #allocation1 [shape = 'u32[72,128]{1,0:T(1,128)}', space=vmem, size = 0x9000, scoped, tag = 'internal scratch']
  %s0 = inlined_call_operand.hbm [shape: f32[1,192], index: 0, kind: input, shape index: {}]
  %s1 = inlined_call_operand.hbm [shape: f32[1,64], index: 1, kind: input, shape index: {}]
  %s2 = inlined_call_operand.hbm [shape: f32[192,1024], index: 2, kind: input, shape index: {}]
  %s3 = inlined_call_operand.hbm [shape: f32[64,1024], index: 3, kind: input, shape index: {}]
  %s4 = inlined_call_operand.hbm [shape: f32[1,1024], index: 4, kind: input, shape index: {}]
  %s5 = inlined_call_operand.hbm [shape: f32[1024,128], index: 5, kind: input, shape index: {}]
  %s6 = inlined_call_operand.vmem [shape: f32[1,128], index: 6, kind: input, shape index: {}]
  %s7 = inlined_call_operand.hbm [shape: f32[1,128], index: 7, kind: output, shape index: {}]
  %s8 = sld [smem:[#allocation0]]
  $region62: #{tpu_custom_call.1} parent=0
    _
  %s10 = ssub.s32 1, %s8
  %s11 = scalar_select 0, %s10, %s8
  $region1: #{tpu_custom_call.1} parent=0
    #allocation2 [shape = 'u8[1024]{0}', space=vmem, size = 0x400, scoped, tag = 'input window, operand 0, single buffered']
    #allocation3 [shape = 's32[1]{0}', space=sflag, size = 0x4, scoped, tag = 'scoped memory for tpu_custom_call.1']
    #allocation4 [shape = 's32[1]{0}', space=sflag, size = 0x4, scoped, tag = 'scoped memory for tpu_custom_call.1']
    #allocation5 [shape = 'u8[512]{0}', space=vmem, size = 0x400, scoped, tag = 'input window, operand 1, single buffered']
    #allocation6 [shape = 's32[1]{0}', space=sflag, size = 0x4, scoped, tag = 'scoped memory for tpu_custom_call.1']
    #allocation7 [shape = 'u8[786432]{0}', space=vmem, size = 0xc0000, scoped, tag = 'input window, operand 2, single buffered']
    #allocation8 [shape = 'u8[262144]{0}', space=vmem, size = 0x40000, scoped, tag = 'input window, operand 3, single buffered']
    #allocation9 [shape = 's32[1]{0}', space=sflag, size = 0x4, scoped, tag = 'scoped memory for tpu_custom_call.1']
    #allocation10 [shape = 'u8[4096]{0}', space=vmem, size = 0x1000, scoped, tag = 'input window, operand 4, single buffered']
    #allocation11 [shape = 'u8[524288]{0}', space=vmem, size = 0x80000, scoped, tag = 'input window, operand 5, single buffered']
    #allocation12 [shape = 's32[1]{0}', space=sflag, size = 0x4, scoped, tag = 'scoped memory for tpu_custom_call.1']
    #allocation13 [shape = 'u8[512]{0}', space=vmem, size = 0x400, scoped, tag = 'output window, operand 0, single buffered']
    %12 = vsyncpa [#allocation3], 0
    %13 = vsyncpa [#allocation6], 0
    %14 = vsyncpa [#allocation9], 0
    %15 = vsyncpa [#allocation12], 0
    %16 = vsyncpa [#allocation4], 0
    // Predicated region
    $region2: #{tpu_custom_call.1} parent=1 // pred_check
      _
    $region3: #{tpu_custom_call.1} parent=1 // pred_check_branch
      %18 = sbr.rel (0) target = $region5
    $region4: #{tpu_custom_call.1} parent=1 // pred_region
      %20 = vsyncadd [#allocation3], 0
      %s22 = sshll.u32 %s0, 4
      %s23 = int_to_ptr.hbm [resolvable:$true] %s22
      %s24 = sshll.u32 [#allocation2], 4
      %s25 = int_to_ptr.vmem [resolvable:$true] %s24
      %27 = dma.hbm_to_vmem [thread:$0]  %s23, 32, %s25, [#allocation3]
    $region5: #{tpu_custom_call.1} parent=1 // pred_fallthru
      _
    // Predicated region
    $region6: #{tpu_custom_call.1} parent=1 // pred_check
      _
    $region7: #{tpu_custom_call.1} parent=1 // pred_check_branch
      %29 = sbr.rel (0) target = $region9
    $region8: #{tpu_custom_call.1} parent=1 // pred_region
      %31 = vsyncadd [#allocation6], 0
      %s33 = sshll.u32 %s1, 4
      %s34 = int_to_ptr.hbm [resolvable:$true] %s33
      %s35 = sshll.u32 [#allocation5], 4
      %s36 = int_to_ptr.vmem [resolvable:$true] %s35
      %38 = dma.hbm_to_vmem [thread:$0]  %s34, 16, %s36, [#allocation6]
    $region9: #{tpu_custom_call.1} parent=1 // pred_fallthru
      _
    // Predicated region
    $region10: #{tpu_custom_call.1} parent=1 // pred_check
      _
    $region11: #{tpu_custom_call.1} parent=1 // pred_check_branch
      %40 = sbr.rel (0) target = $region13
    $region12: #{tpu_custom_call.1} parent=1 // pred_region
      %42 = vsyncadd [#allocation6], 0
      %s43 = sshll.u32 %s2, 4
      %s44 = int_to_ptr.hbm [resolvable:$true] %s43
      %s45 = sshll.u32 [#allocation7], 4
      %s46 = int_to_ptr.vmem [resolvable:$true] %s45
      %51 = dma.hbm_to_vmem [thread:$0]  %s44, 24576, %s46, [#allocation6], 1024, 1024, 64
    $region13: #{tpu_custom_call.1} parent=1 // pred_fallthru
      _
    // Predicated region
    $region14: #{tpu_custom_call.1} parent=1 // pred_check
      _
    $region15: #{tpu_custom_call.1} parent=1 // pred_check_branch
      %53 = sbr.rel (0) target = $region17
    $region16: #{tpu_custom_call.1} parent=1 // pred_region
      %55 = vsyncadd [#allocation9], 0
      %s56 = sshll.u32 %s3, 4
      %s57 = int_to_ptr.hbm [resolvable:$true] %s56
      %s58 = sshll.u32 [#allocation8], 4
      %s59 = int_to_ptr.vmem [resolvable:$true] %s58
      %64 = dma.hbm_to_vmem [thread:$0]  %s57, 8192, %s59, [#allocation9], 1024, 1024, 64
    $region17: #{tpu_custom_call.1} parent=1 // pred_fallthru
      _
    // Predicated region
    $region18: #{tpu_custom_call.1} parent=1 // pred_check
      _
    $region19: #{tpu_custom_call.1} parent=1 // pred_check_branch
      %66 = sbr.rel (0) target = $region21
    $region20: #{tpu_custom_call.1} parent=1 // pred_region
      %68 = vsyncadd [#allocation9], 0
      %s70 = sshll.u32 %s4, 4
      %s71 = int_to_ptr.hbm [resolvable:$true] %s70
      %s72 = sshll.u32 [#allocation10], 4
      %s73 = int_to_ptr.vmem [resolvable:$true] %s72
      %75 = dma.hbm_to_vmem [thread:$0]  %s71, 128, %s73, [#allocation9]
    $region21: #{tpu_custom_call.1} parent=1 // pred_fallthru
      _
    // Predicated region
    $region22: #{tpu_custom_call.1} parent=1 // pred_check
      _
    $region23: #{tpu_custom_call.1} parent=1 // pred_check_branch
      %77 = sbr.rel (0) target = $region25
    $region24: #{tpu_custom_call.1} parent=1 // pred_region
      %79 = vsyncadd [#allocation12], 0
      %s80 = sshll.u32 %s5, 4
      %s81 = int_to_ptr.hbm [resolvable:$true] %s80
      %s82 = sshll.u32 [#allocation11], 4
      %s83 = int_to_ptr.vmem [resolvable:$true] %s82
      %88 = dma.hbm_to_vmem [thread:$0]  %s81, 16384, %s83, [#allocation12], 128, 128, 8
    $region25: #{tpu_custom_call.1} parent=1 // pred_fallthru
      _
    // Predicated region
    $region26: #{tpu_custom_call.1} parent=1 // pred_check
      _
    $region27: #{tpu_custom_call.1} parent=1 // pred_check_branch
      %90 = sbr.rel (0) target = $region29
    $region28: #{tpu_custom_call.1} parent=1 // pred_region
      _
    $region29: #{tpu_custom_call.1} parent=1 // pred_fallthru
      _
    // Predicated region
    $region30: #{tpu_custom_call.1} parent=1 // pred_check
      _
    $region31: #{tpu_custom_call.1} parent=1 // pred_check_branch
      %92 = sbr.rel (0) target = $region33
    $region32: #{tpu_custom_call.1} parent=1 // pred_region
      %94 = dma.done [#allocation3], 32
    $region33: #{tpu_custom_call.1} parent=1 // pred_fallthru
      _
    // Predicated region
    $region34: #{tpu_custom_call.1} parent=1 // pred_check
      _
    $region35: #{tpu_custom_call.1} parent=1 // pred_check_branch
      %96 = sbr.rel (0) target = $region37
    $region36: #{tpu_custom_call.1} parent=1 // pred_region
      %98 = dma.done [#allocation6], 16
    $region37: #{tpu_custom_call.1} parent=1 // pred_fallthru
      _
    // Predicated region
    $region38: #{tpu_custom_call.1} parent=1 // pred_check
      _
    $region39: #{tpu_custom_call.1} parent=1 // pred_check_branch
      %100 = sbr.rel (0) target = $region41
    $region40: #{tpu_custom_call.1} parent=1 // pred_region
      %102 = dma.done [#allocation6], 24576
    $region41: #{tpu_custom_call.1} parent=1 // pred_fallthru
      _
    // Predicated region
    $region42: #{tpu_custom_call.1} parent=1 // pred_check
      _
    $region43: #{tpu_custom_call.1} parent=1 // pred_check_branch
      %104 = sbr.rel (0) target = $region45
    $region44: #{tpu_custom_call.1} parent=1 // pred_region
      %106 = dma.done [#allocation9], 8192
    $region45: #{tpu_custom_call.1} parent=1 // pred_fallthru
      _
    // Predicated region
    $region46: #{tpu_custom_call.1} parent=1 // pred_check
      _
    $region47: #{tpu_custom_call.1} parent=1 // pred_check_branch
      %108 = sbr.rel (0) target = $region49
    $region48: #{tpu_custom_call.1} parent=1 // pred_region
      %110 = dma.done [#allocation9], 128
    $region49: #{tpu_custom_call.1} parent=1 // pred_fallthru
      _
    // Predicated region
    $region50: #{tpu_custom_call.1} parent=1 // pred_check
      _
    $region51: #{tpu_custom_call.1} parent=1 // pred_check_branch
      %112 = sbr.rel (0) target = $region53
    $region52: #{tpu_custom_call.1} parent=1 // pred_region
      %114 = dma.done [#allocation12], 16384
    $region53: #{tpu_custom_call.1} parent=1 // pred_fallthru
      _
    %v115 = vld [vmem:[#allocation2] sm:$0x3]
    %v116 = vld [vmem:[#allocation7] sm:$0xff]
    %v117 = vld [vmem:[#allocation7 + $0x8] sm:$0xff]
    %v118 = vld [vmem:[#allocation7 + $0x10] sm:$0xff]
    %v119 = vld [vmem:[#allocation7 + $0x18] sm:$0xff]
    %v120 = vld [vmem:[#allocation7 + $0x20] sm:$0xff]
    %v121 = vld [vmem:[#allocation7 + $0x28] sm:$0xff]
    %v122 = vld [vmem:[#allocation7 + $0x30] sm:$0xff]
    %v123 = vld [vmem:[#allocation7 + $0x38] sm:$0xff]
    %v124 = vld [vmem:[#allocation7 + $0x40] sm:$0xff]
    %v125 = vld [vmem:[#allocation7 + $0x48] sm:$0xff]
    %v126 = vld [vmem:[#allocation7 + $0x50] sm:$0xff]
    %v127 = vld [vmem:[#allocation7 + $0x58] sm:$0xff]
    %v128 = vld [vmem:[#allocation7 + $0x60] sm:$0xff]
    %v129 = vld [vmem:[#allocation7 + $0x68] sm:$0xff]
    %v130 = vld [vmem:[#allocation7 + $0x70] sm:$0xff]
    %v131 = vld [vmem:[#allocation7 + $0x78] sm:$0xff]
    %v132 = vld [vmem:[#allocation7 + $0x80] sm:$0xff]
    %v133 = vld [vmem:[#allocation7 + $0x88] sm:$0xff]
    %v134 = vld [vmem:[#allocation7 + $0x90] sm:$0xff]
    %v135 = vld [vmem:[#allocation7 + $0x98] sm:$0xff]
    %v136 = vld [vmem:[#allocation7 + $0xa0] sm:$0xff]
    %v137 = vld [vmem:[#allocation7 + $0xa8] sm:$0xff]
    %v138 = vld [vmem:[#allocation7 + $0xb0] sm:$0xff]
    %v139 = vld [vmem:[#allocation7 + $0xb8] sm:$0xff]
    %v140 = vld [vmem:[#allocation7 + $0xc0] sm:$0xff]
    %v141 = vld [vmem:[#allocation7 + $0xc8] sm:$0xff]
    %v142 = vld [vmem:[#allocation7 + $0xd0] sm:$0xff]
    %v143 = vld [vmem:[#allocation7 + $0xd8] sm:$0xff]
    %v144 = vld [vmem:[#allocation7 + $0xe0] sm:$0xff]
    %v145 = vld [vmem:[#allocation7 + $0xe8] sm:$0xff]
    %v146 = vld [vmem:[#allocation7 + $0xf0] sm:$0xff]
    %v147 = vld [vmem:[#allocation7 + $0xf8] sm:$0xff]
    %v148 = vld [vmem:[#allocation7 + $0x100] sm:$0xff]
    %v149 = vld [vmem:[#allocation7 + $0x108] sm:$0xff]
    %v150 = vld [vmem:[#allocation7 + $0x110] sm:$0xff]
    %v151 = vld [vmem:[#allocation7 + $0x118] sm:$0xff]
    %v152 = vld [vmem:[#allocation7 + $0x120] sm:$0xff]
    %v153 = vld [vmem:[#allocation7 + $0x128] sm:$0xff]
    %v154 = vld [vmem:[#allocation7 + $0x130] sm:$0xff]
    %v155 = vld [vmem:[#allocation7 + $0x138] sm:$0xff]
    %v156 = vld [vmem:[#allocation7 + $0x140] sm:$0xff]
    %v157 = vld [vmem:[#allocation7 + $0x148] sm:$0xff]
    %v158 = vld [vmem:[#allocation7 + $0x150] sm:$0xff]
    %v159 = vld [vmem:[#allocation7 + $0x158] sm:$0xff]
    %v160 = vld [vmem:[#allocation7 + $0x160] sm:$0xff]
    %v161 = vld [vmem:[#allocation7 + $0x168] sm:$0xff]
    %v162 = vld [vmem:[#allocation7 + $0x170] sm:$0xff]
    %v163 = vld [vmem:[#allocation7 + $0x178] sm:$0xff]
    %v164 = vld [vmem:[#allocation7 + $0x180] sm:$0xff]
    %v165 = vld [vmem:[#allocation7 + $0x188] sm:$0xff]
    %v166 = vld [vmem:[#allocation7 + $0x190] sm:$0xff]
    %v167 = vld [vmem:[#allocation7 + $0x198] sm:$0xff]
    %v168 = vld [vmem:[#allocation7 + $0x1a0] sm:$0xff]
    %v169 = vld [vmem:[#allocation7 + $0x1a8] sm:$0xff]
    %v170 = vld [vmem:[#allocation7 + $0x1b0] sm:$0xff]
    %v171 = vld [vmem:[#allocation7 + $0x1b8] sm:$0xff]
    %v172 = vld [vmem:[#allocation7 + $0x1c0] sm:$0xff]
    %v173 = vld [vmem:[#allocation7 + $0x1c8] sm:$0xff]
    %v174 = vld [vmem:[#allocation7 + $0x1d0] sm:$0xff]
    %v175 = vld [vmem:[#allocation7 + $0x1d8] sm:$0xff]
    %v176 = vld [vmem:[#allocation7 + $0x1e0] sm:$0xff]
    %v177 = vld [vmem:[#allocation7 + $0x1e8] sm:$0xff]
    %v178 = vld [vmem:[#allocation7 + $0x1f0] sm:$0xff]
    %v179 = vld [vmem:[#allocation7 + $0x1f8] sm:$0xff]
    %v180 = vld [vmem:[#allocation7 + $0x200] sm:$0xff]
    %v181 = vld [vmem:[#allocation7 + $0x208] sm:$0xff]
    %v182 = vld [vmem:[#allocation7 + $0x210] sm:$0xff]
    %v183 = vld [vmem:[#allocation7 + $0x218] sm:$0xff]
    %v184 = vld [vmem:[#allocation7 + $0x220] sm:$0xff]
    %v185 = vld [vmem:[#allocation7 + $0x228] sm:$0xff]
    %v186 = vld [vmem:[#allocation7 + $0x230] sm:$0xff]
    %v187 = vld [vmem:[#allocation7 + $0x238] sm:$0xff]
    %v188 = vld [vmem:[#allocation7 + $0x240] sm:$0xff]
    %v189 = vld [vmem:[#allocation7 + $0x248] sm:$0xff]
    %v190 = vld [vmem:[#allocation7 + $0x250] sm:$0xff]
    %v191 = vld [vmem:[#allocation7 + $0x258] sm:$0xff]
    %v192 = vld [vmem:[#allocation7 + $0x260] sm:$0xff]
    %v193 = vld [vmem:[#allocation7 + $0x268] sm:$0xff]
    %v194 = vld [vmem:[#allocation7 + $0x270] sm:$0xff]
    %v195 = vld [vmem:[#allocation7 + $0x278] sm:$0xff]
    %v196 = vld [vmem:[#allocation7 + $0x280] sm:$0xff]
    %v197 = vld [vmem:[#allocation7 + $0x288] sm:$0xff]
    %v198 = vld [vmem:[#allocation7 + $0x290] sm:$0xff]
    %v199 = vld [vmem:[#allocation7 + $0x298] sm:$0xff]
    %v200 = vld [vmem:[#allocation7 + $0x2a0] sm:$0xff]
    %v201 = vld [vmem:[#allocation7 + $0x2a8] sm:$0xff]
    %v202 = vld [vmem:[#allocation7 + $0x2b0] sm:$0xff]
    %v203 = vld [vmem:[#allocation7 + $0x2b8] sm:$0xff]
    %v204 = vld [vmem:[#allocation7 + $0x2c0] sm:$0xff]
    %v205 = vld [vmem:[#allocation7 + $0x2c8] sm:$0xff]
    %v206 = vld [vmem:[#allocation7 + $0x2d0] sm:$0xff]
    %v207 = vld [vmem:[#allocation7 + $0x2d8] sm:$0xff]
    %v208 = vld [vmem:[#allocation7 + $0x2e0] sm:$0xff]
    %v209 = vld [vmem:[#allocation7 + $0x2e8] sm:$0xff]
    %v210 = vld [vmem:[#allocation7 + $0x2f0] sm:$0xff]
    %v211 = vld [vmem:[#allocation7 + $0x2f8] sm:$0xff]
    %v212 = vld [vmem:[#allocation7 + $0x300] sm:$0xff]
    %v213 = vld [vmem:[#allocation7 + $0x308] sm:$0xff]
    %v214 = vld [vmem:[#allocation7 + $0x310] sm:$0xff]
    %v215 = vld [vmem:[#allocation7 + $0x318] sm:$0xff]
    %v216 = vld [vmem:[#allocation7 + $0x320] sm:$0xff]
    %v217 = vld [vmem:[#allocation7 + $0x328] sm:$0xff]
    %v218 = vld [vmem:[#allocation7 + $0x330] sm:$0xff]
    %v219 = vld [vmem:[#allocation7 + $0x338] sm:$0xff]
    %v220 = vld [vmem:[#allocation7 + $0x340] sm:$0xff]
    %v221 = vld [vmem:[#allocation7 + $0x348] sm:$0xff]
    %v222 = vld [vmem:[#allocation7 + $0x350] sm:$0xff]
    %v223 = vld [vmem:[#allocation7 + $0x358] sm:$0xff]
    %v224 = vld [vmem:[#allocation7 + $0x360] sm:$0xff]
    %v225 = vld [vmem:[#allocation7 + $0x368] sm:$0xff]
    %v226 = vld [vmem:[#allocation7 + $0x370] sm:$0xff]
    %v227 = vld [vmem:[#allocation7 + $0x378] sm:$0xff]
    %v228 = vld [vmem:[#allocation7 + $0x380] sm:$0xff]
    %v229 = vld [vmem:[#allocation7 + $0x388] sm:$0xff]
    %v230 = vld [vmem:[#allocation7 + $0x390] sm:$0xff]
    %v231 = vld [vmem:[#allocation7 + $0x398] sm:$0xff]
    %v232 = vld [vmem:[#allocation7 + $0x3a0] sm:$0xff]
    %v233 = vld [vmem:[#allocation7 + $0x3a8] sm:$0xff]
    %v234 = vld [vmem:[#allocation7 + $0x3b0] sm:$0xff]
    %v235 = vld [vmem:[#allocation7 + $0x3b8] sm:$0xff]
    %v236 = vld [vmem:[#allocation7 + $0x3c0] sm:$0xff]
    %v237 = vld [vmem:[#allocation7 + $0x3c8] sm:$0xff]
    %v238 = vld [vmem:[#allocation7 + $0x3d0] sm:$0xff]
    %v239 = vld [vmem:[#allocation7 + $0x3d8] sm:$0xff]
    %v240 = vld [vmem:[#allocation7 + $0x3e0] sm:$0xff]
    %v241 = vld [vmem:[#allocation7 + $0x3e8] sm:$0xff]
    %v242 = vld [vmem:[#allocation7 + $0x3f0] sm:$0xff]
    %v243 = vld [vmem:[#allocation7 + $0x3f8] sm:$0xff]
    %v244 = vld [vmem:[#allocation7 + $0x400] sm:$0xff]
    %v245 = vld [vmem:[#allocation7 + $0x408] sm:$0xff]
    %v246 = vld [vmem:[#allocation7 + $0x410] sm:$0xff]
    %v247 = vld [vmem:[#allocation7 + $0x418] sm:$0xff]
    %v248 = vld [vmem:[#allocation7 + $0x420] sm:$0xff]
    %v249 = vld [vmem:[#allocation7 + $0x428] sm:$0xff]
    %v250 = vld [vmem:[#allocation7 + $0x430] sm:$0xff]
    %v251 = vld [vmem:[#allocation7 + $0x438] sm:$0xff]
    %v252 = vld [vmem:[#allocation7 + $0x440] sm:$0xff]
    %v253 = vld [vmem:[#allocation7 + $0x448] sm:$0xff]
    %v254 = vld [vmem:[#allocation7 + $0x450] sm:$0xff]
    %v255 = vld [vmem:[#allocation7 + $0x458] sm:$0xff]
    %v256 = vld [vmem:[#allocation7 + $0x460] sm:$0xff]
    %v257 = vld [vmem:[#allocation7 + $0x468] sm:$0xff]
    %v258 = vld [vmem:[#allocation7 + $0x470] sm:$0xff]
    %v259 = vld [vmem:[#allocation7 + $0x478] sm:$0xff]
    %v260 = vld [vmem:[#allocation7 + $0x480] sm:$0xff]
    %v261 = vld [vmem:[#allocation7 + $0x488] sm:$0xff]
    %v262 = vld [vmem:[#allocation7 + $0x490] sm:$0xff]
    %v263 = vld [vmem:[#allocation7 + $0x498] sm:$0xff]
    %v264 = vld [vmem:[#allocation7 + $0x4a0] sm:$0xff]
    %v265 = vld [vmem:[#allocation7 + $0x4a8] sm:$0xff]
    %v266 = vld [vmem:[#allocation7 + $0x4b0] sm:$0xff]
    %v267 = vld [vmem:[#allocation7 + $0x4b8] sm:$0xff]
    %v268 = vld [vmem:[#allocation7 + $0x4c0] sm:$0xff]
    %v269 = vld [vmem:[#allocation7 + $0x4c8] sm:$0xff]
    %v270 = vld [vmem:[#allocation7 + $0x4d0] sm:$0xff]
    %v271 = vld [vmem:[#allocation7 + $0x4d8] sm:$0xff]
    %v272 = vld [vmem:[#allocation7 + $0x4e0] sm:$0xff]
    %v273 = vld [vmem:[#allocation7 + $0x4e8] sm:$0xff]
    %v274 = vld [vmem:[#allocation7 + $0x4f0] sm:$0xff]
    %v275 = vld [vmem:[#allocation7 + $0x4f8] sm:$0xff]
    %v276 = vld [vmem:[#allocation7 + $0x500] sm:$0xff]
    %v277 = vld [vmem:[#allocation7 + $0x508] sm:$0xff]
    %v278 = vld [vmem:[#allocation7 + $0x510] sm:$0xff]
    %v279 = vld [vmem:[#allocation7 + $0x518] sm:$0xff]
    %v280 = vld [vmem:[#allocation7 + $0x520] sm:$0xff]
    %v281 = vld [vmem:[#allocation7 + $0x528] sm:$0xff]
    %v282 = vld [vmem:[#allocation7 + $0x530] sm:$0xff]
    %v283 = vld [vmem:[#allocation7 + $0x538] sm:$0xff]
    %v284 = vld [vmem:[#allocation7 + $0x540] sm:$0xff]
    %v285 = vld [vmem:[#allocation7 + $0x548] sm:$0xff]
    %v286 = vld [vmem:[#allocation7 + $0x550] sm:$0xff]
    %v287 = vld [vmem:[#allocation7 + $0x558] sm:$0xff]
    %v288 = vld [vmem:[#allocation7 + $0x560] sm:$0xff]
    %v289 = vld [vmem:[#allocation7 + $0x568] sm:$0xff]
    %v290 = vld [vmem:[#allocation7 + $0x570] sm:$0xff]
    %v291 = vld [vmem:[#allocation7 + $0x578] sm:$0xff]
    %v292 = vld [vmem:[#allocation7 + $0x580] sm:$0xff]
    %v293 = vld [vmem:[#allocation7 + $0x588] sm:$0xff]
    %v294 = vld [vmem:[#allocation7 + $0x590] sm:$0xff]
    %v295 = vld [vmem:[#allocation7 + $0x598] sm:$0xff]
    %v296 = vld [vmem:[#allocation7 + $0x5a0] sm:$0xff]
    %v297 = vld [vmem:[#allocation7 + $0x5a8] sm:$0xff]
    %v298 = vld [vmem:[#allocation7 + $0x5b0] sm:$0xff]
    %v299 = vld [vmem:[#allocation7 + $0x5b8] sm:$0xff]
    %v300 = vld [vmem:[#allocation7 + $0x5c0] sm:$0xff]
    %v301 = vld [vmem:[#allocation7 + $0x5c8] sm:$0xff]
    %v302 = vld [vmem:[#allocation7 + $0x5d0] sm:$0xff]
    %v303 = vld [vmem:[#allocation7 + $0x5d8] sm:$0xff]
    %v304 = vld [vmem:[#allocation7 + $0x5e0] sm:$0xff]
    %v305 = vld [vmem:[#allocation7 + $0x5e8] sm:$0xff]
    %v306 = vld [vmem:[#allocation7 + $0x5f0] sm:$0xff]
    %v307 = vld [vmem:[#allocation7 + $0x5f8] sm:$0xff]
    %v308 = vld [vmem:[#allocation5] sm:$0x1]
    %v309 = vld [vmem:[#allocation8] sm:$0xff]
    %v310 = vld [vmem:[#allocation8 + $0x8] sm:$0xff]
    %v311 = vld [vmem:[#allocation8 + $0x10] sm:$0xff]
    %v312 = vld [vmem:[#allocation8 + $0x18] sm:$0xff]
    %v313 = vld [vmem:[#allocation8 + $0x20] sm:$0xff]
    %v314 = vld [vmem:[#allocation8 + $0x28] sm:$0xff]
    %v315 = vld [vmem:[#allocation8 + $0x30] sm:$0xff]
    %v316 = vld [vmem:[#allocation8 + $0x38] sm:$0xff]
    %v317 = vld [vmem:[#allocation8 + $0x40] sm:$0xff]
    %v318 = vld [vmem:[#allocation8 + $0x48] sm:$0xff]
    %v319 = vld [vmem:[#allocation8 + $0x50] sm:$0xff]
    %v320 = vld [vmem:[#allocation8 + $0x58] sm:$0xff]
    %v321 = vld [vmem:[#allocation8 + $0x60] sm:$0xff]
    %v322 = vld [vmem:[#allocation8 + $0x68] sm:$0xff]
    %v323 = vld [vmem:[#allocation8 + $0x70] sm:$0xff]
    %v324 = vld [vmem:[#allocation8 + $0x78] sm:$0xff]
    %v325 = vld [vmem:[#allocation8 + $0x80] sm:$0xff]
    %v326 = vld [vmem:[#allocation8 + $0x88] sm:$0xff]
    %v327 = vld [vmem:[#allocation8 + $0x90] sm:$0xff]
    %v328 = vld [vmem:[#allocation8 + $0x98] sm:$0xff]
    %v329 = vld [vmem:[#allocation8 + $0xa0] sm:$0xff]
    %v330 = vld [vmem:[#allocation8 + $0xa8] sm:$0xff]
    %v331 = vld [vmem:[#allocation8 + $0xb0] sm:$0xff]
    %v332 = vld [vmem:[#allocation8 + $0xb8] sm:$0xff]
    %v333 = vld [vmem:[#allocation8 + $0xc0] sm:$0xff]
    %v334 = vld [vmem:[#allocation8 + $0xc8] sm:$0xff]
    %v335 = vld [vmem:[#allocation8 + $0xd0] sm:$0xff]
    %v336 = vld [vmem:[#allocation8 + $0xd8] sm:$0xff]
    %v337 = vld [vmem:[#allocation8 + $0xe0] sm:$0xff]
    %v338 = vld [vmem:[#allocation8 + $0xe8] sm:$0xff]
    %v339 = vld [vmem:[#allocation8 + $0xf0] sm:$0xff]
    %v340 = vld [vmem:[#allocation8 + $0xf8] sm:$0xff]
    %v341 = vld [vmem:[#allocation8 + $0x100] sm:$0xff]
    %v342 = vld [vmem:[#allocation8 + $0x108] sm:$0xff]
    %v343 = vld [vmem:[#allocation8 + $0x110] sm:$0xff]
    %v344 = vld [vmem:[#allocation8 + $0x118] sm:$0xff]
    %v345 = vld [vmem:[#allocation8 + $0x120] sm:$0xff]
    %v346 = vld [vmem:[#allocation8 + $0x128] sm:$0xff]
    %v347 = vld [vmem:[#allocation8 + $0x130] sm:$0xff]
    %v348 = vld [vmem:[#allocation8 + $0x138] sm:$0xff]
    %v349 = vld [vmem:[#allocation8 + $0x140] sm:$0xff]
    %v350 = vld [vmem:[#allocation8 + $0x148] sm:$0xff]
    %v351 = vld [vmem:[#allocation8 + $0x150] sm:$0xff]
    %v352 = vld [vmem:[#allocation8 + $0x158] sm:$0xff]
    %v353 = vld [vmem:[#allocation8 + $0x160] sm:$0xff]
    %v354 = vld [vmem:[#allocation8 + $0x168] sm:$0xff]
    %v355 = vld [vmem:[#allocation8 + $0x170] sm:$0xff]
    %v356 = vld [vmem:[#allocation8 + $0x178] sm:$0xff]
    %v357 = vld [vmem:[#allocation8 + $0x180] sm:$0xff]
    %v358 = vld [vmem:[#allocation8 + $0x188] sm:$0xff]
    %v359 = vld [vmem:[#allocation8 + $0x190] sm:$0xff]
    %v360 = vld [vmem:[#allocation8 + $0x198] sm:$0xff]
    %v361 = vld [vmem:[#allocation8 + $0x1a0] sm:$0xff]
    %v362 = vld [vmem:[#allocation8 + $0x1a8] sm:$0xff]
    %v363 = vld [vmem:[#allocation8 + $0x1b0] sm:$0xff]
    %v364 = vld [vmem:[#allocation8 + $0x1b8] sm:$0xff]
    %v365 = vld [vmem:[#allocation8 + $0x1c0] sm:$0xff]
    %v366 = vld [vmem:[#allocation8 + $0x1c8] sm:$0xff]
    %v367 = vld [vmem:[#allocation8 + $0x1d0] sm:$0xff]
    %v368 = vld [vmem:[#allocation8 + $0x1d8] sm:$0xff]
    %v369 = vld [vmem:[#allocation8 + $0x1e0] sm:$0xff]
    %v370 = vld [vmem:[#allocation8 + $0x1e8] sm:$0xff]
    %v371 = vld [vmem:[#allocation8 + $0x1f0] sm:$0xff]
    %v372 = vld [vmem:[#allocation8 + $0x1f8] sm:$0xff]
    %vm373 = vcmask 523264
    %v375 = vsel %vm373, %v308, 0
    %377 = vmatpush.msra.mxu0 0.0
    %378 = vmatpush.msra.mxu0 0.0
    %379 = vmatpush.msra.mxu0 0.0
    %380 = vmatpush.msra.mxu0 0.0
    %381 = vmatpush.msra.mxu0 0.0
    %382 = vmatpush.msra.mxu0 0.0
    %383 = vmatpush.msra.mxu0 0.0
    %384 = vmatpush.msra.mxu0 0.0
    %385 = vmatpush.msra.mxu0 %v365
    %386 = vmatpush.msra.mxu0 %v357
    %387 = vmatpush.msra.mxu0 %v349
    %388 = vmatpush.msra.mxu0 %v341
    %389 = vmatpush.msra.mxu0 %v333
    %390 = vmatpush.msra.mxu0 %v325
    %391 = vmatpush.msra.mxu0 %v317
    %392 = vmatpush.msra.mxu0 %v309
    %393 = vmatmul.f32.gmra.mxu0 %v375
    %v394 = vpop.f32.mrf.mxu0
    %v395 = vadd.f32 0.0, %v394
    %396 = vdwg.mxu0
    %397 = vmatpush.msra.mxu0 0.0
    %398 = vmatpush.msra.mxu0 0.0
    %399 = vmatpush.msra.mxu0 0.0
    %400 = vmatpush.msra.mxu0 0.0
    %401 = vmatpush.msra.mxu0 0.0
    %402 = vmatpush.msra.mxu0 0.0
    %403 = vmatpush.msra.mxu0 0.0
    %404 = vmatpush.msra.mxu0 0.0
    %405 = vmatpush.msra.mxu0 %v366
    %406 = vmatpush.msra.mxu0 %v358
    %407 = vmatpush.msra.mxu0 %v350
    %408 = vmatpush.msra.mxu0 %v342
    %409 = vmatpush.msra.mxu0 %v334
    %410 = vmatpush.msra.mxu0 %v326
    %411 = vmatpush.msra.mxu0 %v318
    %412 = vmatpush.msra.mxu0 %v310
    %413 = vmatmul.f32.gmra.mxu0 %v375
    %v414 = vpop.f32.mrf.mxu0
    %v415 = vadd.f32 0.0, %v414
    %416 = vdwg.mxu0
    %417 = vmatpush.msra.mxu0 0.0
    %418 = vmatpush.msra.mxu0 0.0
    %419 = vmatpush.msra.mxu0 0.0
    %420 = vmatpush.msra.mxu0 0.0
    %421 = vmatpush.msra.mxu0 0.0
    %422 = vmatpush.msra.mxu0 0.0
    %423 = vmatpush.msra.mxu0 0.0
    %424 = vmatpush.msra.mxu0 0.0
    %425 = vmatpush.msra.mxu0 %v367
    %426 = vmatpush.msra.mxu0 %v359
    %427 = vmatpush.msra.mxu0 %v351
    %428 = vmatpush.msra.mxu0 %v343
    %429 = vmatpush.msra.mxu0 %v335
    %430 = vmatpush.msra.mxu0 %v327
    %431 = vmatpush.msra.mxu0 %v319
    %432 = vmatpush.msra.mxu0 %v311
    %433 = vmatmul.f32.gmra.mxu0 %v375
    %v434 = vpop.f32.mrf.mxu0
    %v435 = vadd.f32 0.0, %v434
    %436 = vdwg.mxu0
    %437 = vmatpush.msra.mxu0 0.0
    %438 = vmatpush.msra.mxu0 0.0
    %439 = vmatpush.msra.mxu0 0.0
    %440 = vmatpush.msra.mxu0 0.0
    %441 = vmatpush.msra.mxu0 0.0
    %442 = vmatpush.msra.mxu0 0.0
    %443 = vmatpush.msra.mxu0 0.0
    %444 = vmatpush.msra.mxu0 0.0
    %445 = vmatpush.msra.mxu0 %v368
    %446 = vmatpush.msra.mxu0 %v360
    %447 = vmatpush.msra.mxu0 %v352
    %448 = vmatpush.msra.mxu0 %v344
    %449 = vmatpush.msra.mxu0 %v336
    %450 = vmatpush.msra.mxu0 %v328
    %451 = vmatpush.msra.mxu0 %v320
    %452 = vmatpush.msra.mxu0 %v312
    %453 = vmatmul.f32.gmra.mxu0 %v375
    %v454 = vpop.f32.mrf.mxu0
    %v455 = vadd.f32 0.0, %v454
    %456 = vdwg.mxu0
    %457 = vmatpush.msra.mxu0 0.0
    %458 = vmatpush.msra.mxu0 0.0
    %459 = vmatpush.msra.mxu0 0.0
    %460 = vmatpush.msra.mxu0 0.0
    %461 = vmatpush.msra.mxu0 0.0
    %462 = vmatpush.msra.mxu0 0.0
    %463 = vmatpush.msra.mxu0 0.0
    %464 = vmatpush.msra.mxu0 0.0
    %465 = vmatpush.msra.mxu0 %v369
    %466 = vmatpush.msra.mxu0 %v361
    %467 = vmatpush.msra.mxu0 %v353
    %468 = vmatpush.msra.mxu0 %v345
    %469 = vmatpush.msra.mxu0 %v337
    %470 = vmatpush.msra.mxu0 %v329
    %471 = vmatpush.msra.mxu0 %v321
    %472 = vmatpush.msra.mxu0 %v313
    %473 = vmatmul.f32.gmra.mxu0 %v375
    %v474 = vpop.f32.mrf.mxu0
    %v475 = vadd.f32 0.0, %v474
    %476 = vdwg.mxu0
    %477 = vmatpush.msra.mxu0 0.0
    %478 = vmatpush.msra.mxu0 0.0
    %479 = vmatpush.msra.mxu0 0.0
    %480 = vmatpush.msra.mxu0 0.0
    %481 = vmatpush.msra.mxu0 0.0
    %482 = vmatpush.msra.mxu0 0.0
    %483 = vmatpush.msra.mxu0 0.0
    %484 = vmatpush.msra.mxu0 0.0
    %485 = vmatpush.msra.mxu0 %v370
    %486 = vmatpush.msra.mxu0 %v362
    %487 = vmatpush.msra.mxu0 %v354
    %488 = vmatpush.msra.mxu0 %v346
    %489 = vmatpush.msra.mxu0 %v338
    %490 = vmatpush.msra.mxu0 %v330
    %491 = vmatpush.msra.mxu0 %v322
    %492 = vmatpush.msra.mxu0 %v314
    %493 = vmatmul.f32.gmra.mxu0 %v375
    %v494 = vpop.f32.mrf.mxu0
    %v495 = vadd.f32 0.0, %v494
    %496 = vdwg.mxu0
    %497 = vmatpush.msra.mxu0 0.0
    %498 = vmatpush.msra.mxu0 0.0
    %499 = vmatpush.msra.mxu0 0.0
    %500 = vmatpush.msra.mxu0 0.0
    %501 = vmatpush.msra.mxu0 0.0
    %502 = vmatpush.msra.mxu0 0.0
    %503 = vmatpush.msra.mxu0 0.0
    %504 = vmatpush.msra.mxu0 0.0
    %505 = vmatpush.msra.mxu0 %v371
    %506 = vmatpush.msra.mxu0 %v363
    %507 = vmatpush.msra.mxu0 %v355
    %508 = vmatpush.msra.mxu0 %v347
    %509 = vmatpush.msra.mxu0 %v339
    %510 = vmatpush.msra.mxu0 %v331
    %511 = vmatpush.msra.mxu0 %v323
    %512 = vmatpush.msra.mxu0 %v315
    %513 = vmatmul.f32.gmra.mxu0 %v375
    %v514 = vpop.f32.mrf.mxu0
    %v515 = vadd.f32 0.0, %v514
    %516 = vdwg.mxu0
    %517 = vmatpush.msra.mxu0 0.0
    %518 = vmatpush.msra.mxu0 0.0
    %519 = vmatpush.msra.mxu0 0.0
    %520 = vmatpush.msra.mxu0 0.0
    %521 = vmatpush.msra.mxu0 0.0
    %522 = vmatpush.msra.mxu0 0.0
    %523 = vmatpush.msra.mxu0 0.0
    %524 = vmatpush.msra.mxu0 0.0
    %525 = vmatpush.msra.mxu0 %v372
    %526 = vmatpush.msra.mxu0 %v364
    %527 = vmatpush.msra.mxu0 %v356
    %528 = vmatpush.msra.mxu0 %v348
    %529 = vmatpush.msra.mxu0 %v340
    %530 = vmatpush.msra.mxu0 %v332
    %531 = vmatpush.msra.mxu0 %v324
    %532 = vmatpush.msra.mxu0 %v316
    %533 = vmatmul.f32.gmra.mxu0 %v375
    %v534 = vpop.f32.mrf.mxu0
    %v535 = vadd.f32 0.0, %v534
    %536 = vdwg.mxu0
    %v538 = vperm.slane %v115, 0
    %v539 = vperm.slane %v115, 1
    %v541 = vsel %vm373, %v539, 0
    %543 = vmatpush.msra.mxu0 %v236
    %544 = vmatpush.msra.mxu0 %v228
    %545 = vmatpush.msra.mxu0 %v220
    %546 = vmatpush.msra.mxu0 %v212
    %547 = vmatpush.msra.mxu0 %v204
    %548 = vmatpush.msra.mxu0 %v196
    %549 = vmatpush.msra.mxu0 %v188
    %550 = vmatpush.msra.mxu0 %v180
    %551 = vmatpush.msra.mxu0 %v172
    %552 = vmatpush.msra.mxu0 %v164
    %553 = vmatpush.msra.mxu0 %v156
    %554 = vmatpush.msra.mxu0 %v148
    %555 = vmatpush.msra.mxu0 %v140
    %556 = vmatpush.msra.mxu0 %v132
    %557 = vmatpush.msra.mxu0 %v124
    %558 = vmatpush.msra.mxu0 %v116
    %559 = vmatmul.f32.gmra.mxu0 %v538
    %v560 = vpop.f32.mrf.mxu0
    %v561 = vadd.f32 %v395, %v560
    %562 = vdwg.mxu0
    %563 = vmatpush.msra.mxu0 0.0
    %564 = vmatpush.msra.mxu0 0.0
    %565 = vmatpush.msra.mxu0 0.0
    %566 = vmatpush.msra.mxu0 0.0
    %567 = vmatpush.msra.mxu0 0.0
    %568 = vmatpush.msra.mxu0 0.0
    %569 = vmatpush.msra.mxu0 0.0
    %570 = vmatpush.msra.mxu0 0.0
    %571 = vmatpush.msra.mxu0 %v300
    %572 = vmatpush.msra.mxu0 %v292
    %573 = vmatpush.msra.mxu0 %v284
    %574 = vmatpush.msra.mxu0 %v276
    %575 = vmatpush.msra.mxu0 %v268
    %576 = vmatpush.msra.mxu0 %v260
    %577 = vmatpush.msra.mxu0 %v252
    %578 = vmatpush.msra.mxu0 %v244
    %579 = vmatmul.f32.gmra.mxu0 %v541
    %v580 = vpop.f32.mrf.mxu0
    %v581 = vadd.f32 %v561, %v580
    %582 = vdwg.mxu0
    %583 = vmatpush.msra.mxu0 %v237
    %584 = vmatpush.msra.mxu0 %v229
    %585 = vmatpush.msra.mxu0 %v221
    %586 = vmatpush.msra.mxu0 %v213
    %587 = vmatpush.msra.mxu0 %v205
    %588 = vmatpush.msra.mxu0 %v197
    %589 = vmatpush.msra.mxu0 %v189
    %590 = vmatpush.msra.mxu0 %v181
    %591 = vmatpush.msra.mxu0 %v173
    %592 = vmatpush.msra.mxu0 %v165
    %593 = vmatpush.msra.mxu0 %v157
    %594 = vmatpush.msra.mxu0 %v149
    %595 = vmatpush.msra.mxu0 %v141
    %596 = vmatpush.msra.mxu0 %v133
    %597 = vmatpush.msra.mxu0 %v125
    %598 = vmatpush.msra.mxu0 %v117
    %599 = vmatmul.f32.gmra.mxu0 %v538
    %v600 = vpop.f32.mrf.mxu0
    %v601 = vadd.f32 %v415, %v600
    %602 = vdwg.mxu0
    %603 = vmatpush.msra.mxu0 0.0
    %604 = vmatpush.msra.mxu0 0.0
    %605 = vmatpush.msra.mxu0 0.0
    %606 = vmatpush.msra.mxu0 0.0
    %607 = vmatpush.msra.mxu0 0.0
    %608 = vmatpush.msra.mxu0 0.0
    %609 = vmatpush.msra.mxu0 0.0
    %610 = vmatpush.msra.mxu0 0.0
    %611 = vmatpush.msra.mxu0 %v301
    %612 = vmatpush.msra.mxu0 %v293
    %613 = vmatpush.msra.mxu0 %v285
    %614 = vmatpush.msra.mxu0 %v277
    %615 = vmatpush.msra.mxu0 %v269
    %616 = vmatpush.msra.mxu0 %v261
    %617 = vmatpush.msra.mxu0 %v253
    %618 = vmatpush.msra.mxu0 %v245
    %619 = vmatmul.f32.gmra.mxu0 %v541
    %v620 = vpop.f32.mrf.mxu0
    %v621 = vadd.f32 %v601, %v620
    %622 = vdwg.mxu0
    %623 = vmatpush.msra.mxu0 %v238
    %624 = vmatpush.msra.mxu0 %v230
    %625 = vmatpush.msra.mxu0 %v222
    %626 = vmatpush.msra.mxu0 %v214
    %627 = vmatpush.msra.mxu0 %v206
    %628 = vmatpush.msra.mxu0 %v198
    %629 = vmatpush.msra.mxu0 %v190
    %630 = vmatpush.msra.mxu0 %v182
    %631 = vmatpush.msra.mxu0 %v174
    %632 = vmatpush.msra.mxu0 %v166
    %633 = vmatpush.msra.mxu0 %v158
    %634 = vmatpush.msra.mxu0 %v150
    %635 = vmatpush.msra.mxu0 %v142
    %636 = vmatpush.msra.mxu0 %v134
    %637 = vmatpush.msra.mxu0 %v126
    %638 = vmatpush.msra.mxu0 %v118
    %639 = vmatmul.f32.gmra.mxu0 %v538
    %v640 = vpop.f32.mrf.mxu0
    %v641 = vadd.f32 %v435, %v640
    %642 = vdwg.mxu0
    %643 = vmatpush.msra.mxu0 0.0
    %644 = vmatpush.msra.mxu0 0.0
    %645 = vmatpush.msra.mxu0 0.0
    %646 = vmatpush.msra.mxu0 0.0
    %647 = vmatpush.msra.mxu0 0.0
    %648 = vmatpush.msra.mxu0 0.0
    %649 = vmatpush.msra.mxu0 0.0
    %650 = vmatpush.msra.mxu0 0.0
    %651 = vmatpush.msra.mxu0 %v302
    %652 = vmatpush.msra.mxu0 %v294
    %653 = vmatpush.msra.mxu0 %v286
    %654 = vmatpush.msra.mxu0 %v278
    %655 = vmatpush.msra.mxu0 %v270
    %656 = vmatpush.msra.mxu0 %v262
    %657 = vmatpush.msra.mxu0 %v254
    %658 = vmatpush.msra.mxu0 %v246
    %659 = vmatmul.f32.gmra.mxu0 %v541
    %v660 = vpop.f32.mrf.mxu0
    %v661 = vadd.f32 %v641, %v660
    %662 = vdwg.mxu0
    %663 = vmatpush.msra.mxu0 %v239
    %664 = vmatpush.msra.mxu0 %v231
    %665 = vmatpush.msra.mxu0 %v223
    %666 = vmatpush.msra.mxu0 %v215
    %667 = vmatpush.msra.mxu0 %v207
    %668 = vmatpush.msra.mxu0 %v199
    %669 = vmatpush.msra.mxu0 %v191
    %670 = vmatpush.msra.mxu0 %v183
    %671 = vmatpush.msra.mxu0 %v175
    %672 = vmatpush.msra.mxu0 %v167
    %673 = vmatpush.msra.mxu0 %v159
    %674 = vmatpush.msra.mxu0 %v151
    %675 = vmatpush.msra.mxu0 %v143
    %676 = vmatpush.msra.mxu0 %v135
    %677 = vmatpush.msra.mxu0 %v127
    %678 = vmatpush.msra.mxu0 %v119
    %679 = vmatmul.f32.gmra.mxu0 %v538
    %v680 = vpop.f32.mrf.mxu0
    %v681 = vadd.f32 %v455, %v680
    %682 = vdwg.mxu0
    %683 = vmatpush.msra.mxu0 0.0
    %684 = vmatpush.msra.mxu0 0.0
    %685 = vmatpush.msra.mxu0 0.0
    %686 = vmatpush.msra.mxu0 0.0
    %687 = vmatpush.msra.mxu0 0.0
    %688 = vmatpush.msra.mxu0 0.0
    %689 = vmatpush.msra.mxu0 0.0
    %690 = vmatpush.msra.mxu0 0.0
    %691 = vmatpush.msra.mxu0 %v303
    %692 = vmatpush.msra.mxu0 %v295
    %693 = vmatpush.msra.mxu0 %v287
    %694 = vmatpush.msra.mxu0 %v279
    %695 = vmatpush.msra.mxu0 %v271
    %696 = vmatpush.msra.mxu0 %v263
    %697 = vmatpush.msra.mxu0 %v255
    %698 = vmatpush.msra.mxu0 %v247
    %699 = vmatmul.f32.gmra.mxu0 %v541
    %v700 = vpop.f32.mrf.mxu0
    %v701 = vadd.f32 %v681, %v700
    %702 = vdwg.mxu0
    %703 = vmatpush.msra.mxu0 %v240
    %704 = vmatpush.msra.mxu0 %v232
    %705 = vmatpush.msra.mxu0 %v224
    %706 = vmatpush.msra.mxu0 %v216
    %707 = vmatpush.msra.mxu0 %v208
    %708 = vmatpush.msra.mxu0 %v200
    %709 = vmatpush.msra.mxu0 %v192
    %710 = vmatpush.msra.mxu0 %v184
    %711 = vmatpush.msra.mxu0 %v176
    %712 = vmatpush.msra.mxu0 %v168
    %713 = vmatpush.msra.mxu0 %v160
    %714 = vmatpush.msra.mxu0 %v152
    %715 = vmatpush.msra.mxu0 %v144
    %716 = vmatpush.msra.mxu0 %v136
    %717 = vmatpush.msra.mxu0 %v128
    %718 = vmatpush.msra.mxu0 %v120
    %719 = vmatmul.f32.gmra.mxu0 %v538
    %v720 = vpop.f32.mrf.mxu0
    %v721 = vadd.f32 %v475, %v720
    %722 = vdwg.mxu0
    %723 = vmatpush.msra.mxu0 0.0
    %724 = vmatpush.msra.mxu0 0.0
    %725 = vmatpush.msra.mxu0 0.0
    %726 = vmatpush.msra.mxu0 0.0
    %727 = vmatpush.msra.mxu0 0.0
    %728 = vmatpush.msra.mxu0 0.0
    %729 = vmatpush.msra.mxu0 0.0
    %730 = vmatpush.msra.mxu0 0.0
    %731 = vmatpush.msra.mxu0 %v304
    %732 = vmatpush.msra.mxu0 %v296
    %733 = vmatpush.msra.mxu0 %v288
    %734 = vmatpush.msra.mxu0 %v280
    %735 = vmatpush.msra.mxu0 %v272
    %736 = vmatpush.msra.mxu0 %v264
    %737 = vmatpush.msra.mxu0 %v256
    %738 = vmatpush.msra.mxu0 %v248
    %739 = vmatmul.f32.gmra.mxu0 %v541
    %v740 = vpop.f32.mrf.mxu0
    %v741 = vadd.f32 %v721, %v740
    %742 = vdwg.mxu0
    %743 = vmatpush.msra.mxu0 %v241
    %744 = vmatpush.msra.mxu0 %v233
    %745 = vmatpush.msra.mxu0 %v225
    %746 = vmatpush.msra.mxu0 %v217
    %747 = vmatpush.msra.mxu0 %v209
    %748 = vmatpush.msra.mxu0 %v201
    %749 = vmatpush.msra.mxu0 %v193
    %750 = vmatpush.msra.mxu0 %v185
    %751 = vmatpush.msra.mxu0 %v177
    %752 = vmatpush.msra.mxu0 %v169
    %753 = vmatpush.msra.mxu0 %v161
    %754 = vmatpush.msra.mxu0 %v153
    %755 = vmatpush.msra.mxu0 %v145
    %756 = vmatpush.msra.mxu0 %v137
    %757 = vmatpush.msra.mxu0 %v129
    %758 = vmatpush.msra.mxu0 %v121
    %759 = vmatmul.f32.gmra.mxu0 %v538
    %v760 = vpop.f32.mrf.mxu0
    %v761 = vadd.f32 %v495, %v760
    %762 = vdwg.mxu0
    %763 = vmatpush.msra.mxu0 0.0
    %764 = vmatpush.msra.mxu0 0.0
    %765 = vmatpush.msra.mxu0 0.0
    %766 = vmatpush.msra.mxu0 0.0
    %767 = vmatpush.msra.mxu0 0.0
    %768 = vmatpush.msra.mxu0 0.0
    %769 = vmatpush.msra.mxu0 0.0
    %770 = vmatpush.msra.mxu0 0.0
    %771 = vmatpush.msra.mxu0 %v305
    %772 = vmatpush.msra.mxu0 %v297
    %773 = vmatpush.msra.mxu0 %v289
    %774 = vmatpush.msra.mxu0 %v281
    %775 = vmatpush.msra.mxu0 %v273
    %776 = vmatpush.msra.mxu0 %v265
    %777 = vmatpush.msra.mxu0 %v257
    %778 = vmatpush.msra.mxu0 %v249
    %779 = vmatmul.f32.gmra.mxu0 %v541
    %v780 = vpop.f32.mrf.mxu0
    %v781 = vadd.f32 %v761, %v780
    %782 = vdwg.mxu0
    %783 = vmatpush.msra.mxu0 %v242
    %784 = vmatpush.msra.mxu0 %v234
    %785 = vmatpush.msra.mxu0 %v226
    %786 = vmatpush.msra.mxu0 %v218
    %787 = vmatpush.msra.mxu0 %v210
    %788 = vmatpush.msra.mxu0 %v202
    %789 = vmatpush.msra.mxu0 %v194
    %790 = vmatpush.msra.mxu0 %v186
    %791 = vmatpush.msra.mxu0 %v178
    %792 = vmatpush.msra.mxu0 %v170
    %793 = vmatpush.msra.mxu0 %v162
    %794 = vmatpush.msra.mxu0 %v154
    %795 = vmatpush.msra.mxu0 %v146
    %796 = vmatpush.msra.mxu0 %v138
    %797 = vmatpush.msra.mxu0 %v130
    %798 = vmatpush.msra.mxu0 %v122
    %799 = vmatmul.f32.gmra.mxu0 %v538
    %v800 = vpop.f32.mrf.mxu0
    %v801 = vadd.f32 %v515, %v800
    %802 = vdwg.mxu0
    %803 = vmatpush.msra.mxu0 0.0
    %804 = vmatpush.msra.mxu0 0.0
    %805 = vmatpush.msra.mxu0 0.0
    %806 = vmatpush.msra.mxu0 0.0
    %807 = vmatpush.msra.mxu0 0.0
    %808 = vmatpush.msra.mxu0 0.0
    %809 = vmatpush.msra.mxu0 0.0
    %810 = vmatpush.msra.mxu0 0.0
    %811 = vmatpush.msra.mxu0 %v306
    %812 = vmatpush.msra.mxu0 %v298
    %813 = vmatpush.msra.mxu0 %v290
    %814 = vmatpush.msra.mxu0 %v282
    %815 = vmatpush.msra.mxu0 %v274
    %816 = vmatpush.msra.mxu0 %v266
    %817 = vmatpush.msra.mxu0 %v258
    %818 = vmatpush.msra.mxu0 %v250
    %819 = vmatmul.f32.gmra.mxu0 %v541
    %v820 = vpop.f32.mrf.mxu0
    %v821 = vadd.f32 %v801, %v820
    %822 = vdwg.mxu0
    %823 = vmatpush.msra.mxu0 %v243
    %824 = vmatpush.msra.mxu0 %v235
    %825 = vmatpush.msra.mxu0 %v227
    %826 = vmatpush.msra.mxu0 %v219
    %827 = vmatpush.msra.mxu0 %v211
    %828 = vmatpush.msra.mxu0 %v203
    %829 = vmatpush.msra.mxu0 %v195
    %830 = vmatpush.msra.mxu0 %v187
    %831 = vmatpush.msra.mxu0 %v179
    %832 = vmatpush.msra.mxu0 %v171
    %833 = vmatpush.msra.mxu0 %v163
    %834 = vmatpush.msra.mxu0 %v155
    %835 = vmatpush.msra.mxu0 %v147
    %836 = vmatpush.msra.mxu0 %v139
    %837 = vmatpush.msra.mxu0 %v131
    %838 = vmatpush.msra.mxu0 %v123
    %839 = vmatmul.f32.gmra.mxu0 %v538
    %v840 = vpop.f32.mrf.mxu0
    %v841 = vadd.f32 %v535, %v840
    %842 = vdwg.mxu0
    %843 = vmatpush.msra.mxu0 0.0
    %844 = vmatpush.msra.mxu0 0.0
    %845 = vmatpush.msra.mxu0 0.0
    %846 = vmatpush.msra.mxu0 0.0
    %847 = vmatpush.msra.mxu0 0.0
    %848 = vmatpush.msra.mxu0 0.0
    %849 = vmatpush.msra.mxu0 0.0
    %850 = vmatpush.msra.mxu0 0.0
    %851 = vmatpush.msra.mxu0 %v307
    %852 = vmatpush.msra.mxu0 %v299
    %853 = vmatpush.msra.mxu0 %v291
    %854 = vmatpush.msra.mxu0 %v283
    %855 = vmatpush.msra.mxu0 %v275
    %856 = vmatpush.msra.mxu0 %v267
    %857 = vmatpush.msra.mxu0 %v259
    %858 = vmatpush.msra.mxu0 %v251
    %859 = vmatmul.f32.gmra.mxu0 %v541
    %v860 = vpop.f32.mrf.mxu0
    %v861 = vadd.f32 %v841, %v860
    %862 = vdwg.mxu0
    %v863 = vld [vmem:[#allocation10] sm:$0xff]
    %v865 = vperm.slane %v863, 0
    %v866 = vperm.slane %v863, 1
    %v867 = vperm.slane %v863, 2
    %v868 = vperm.slane %v863, 3
    %v869 = vperm.slane %v863, 4
    %v870 = vperm.slane %v863, 5
    %v871 = vperm.slane %v863, 6
    %v872 = vperm.slane %v863, 7
    %v881 = vadd.f32 %v581, %v865
    %v882 = vadd.f32 %v621, %v866
    %v883 = vadd.f32 %v661, %v867
    %v884 = vadd.f32 %v701, %v868
    %v885 = vadd.f32 %v741, %v869
    %v886 = vadd.f32 %v781, %v870
    %v887 = vadd.f32 %v821, %v871
    %v888 = vadd.f32 %v861, %v872
    %v889 = vtanh.pop %v881
    %v890 = vtanh.pop %v882
    %v891 = vtanh.pop %v883
    %v892 = vtanh.pop %v884
    %v893 = vtanh.pop %v885
    %v894 = vtanh.pop %v886
    %v895 = vtanh.pop %v887
    %v896 = vtanh.pop %v888
    %v897 = vld [vmem:[#allocation11] sm:$0xff]
    %v898 = vld [vmem:[#allocation11 + $0x8] sm:$0xff]
    %v899 = vld [vmem:[#allocation11 + $0x10] sm:$0xff]
    %v900 = vld [vmem:[#allocation11 + $0x18] sm:$0xff]
    %v901 = vld [vmem:[#allocation11 + $0x20] sm:$0xff]
    %v902 = vld [vmem:[#allocation11 + $0x28] sm:$0xff]
    %v903 = vld [vmem:[#allocation11 + $0x30] sm:$0xff]
    %v904 = vld [vmem:[#allocation11 + $0x38] sm:$0xff]
    %v905 = vld [vmem:[#allocation11 + $0x40] sm:$0xff]
    %v906 = vld [vmem:[#allocation11 + $0x48] sm:$0xff]
    %v907 = vld [vmem:[#allocation11 + $0x50] sm:$0xff]
    %v908 = vld [vmem:[#allocation11 + $0x58] sm:$0xff]
    %v909 = vld [vmem:[#allocation11 + $0x60] sm:$0xff]
    %v910 = vld [vmem:[#allocation11 + $0x68] sm:$0xff]
    %v911 = vld [vmem:[#allocation11 + $0x70] sm:$0xff]
    %v912 = vld [vmem:[#allocation11 + $0x78] sm:$0xff]
    %v913 = vld [vmem:[#allocation11 + $0x80] sm:$0xff]
    %v914 = vld [vmem:[#allocation11 + $0x88] sm:$0xff]
    %v915 = vld [vmem:[#allocation11 + $0x90] sm:$0xff]
    %v916 = vld [vmem:[#allocation11 + $0x98] sm:$0xff]
    %v917 = vld [vmem:[#allocation11 + $0xa0] sm:$0xff]
    %v918 = vld [vmem:[#allocation11 + $0xa8] sm:$0xff]
    %v919 = vld [vmem:[#allocation11 + $0xb0] sm:$0xff]
    %v920 = vld [vmem:[#allocation11 + $0xb8] sm:$0xff]
    %v921 = vld [vmem:[#allocation11 + $0xc0] sm:$0xff]
    %v922 = vld [vmem:[#allocation11 + $0xc8] sm:$0xff]
    %v923 = vld [vmem:[#allocation11 + $0xd0] sm:$0xff]
    %v924 = vld [vmem:[#allocation11 + $0xd8] sm:$0xff]
    %v925 = vld [vmem:[#allocation11 + $0xe0] sm:$0xff]
    %v926 = vld [vmem:[#allocation11 + $0xe8] sm:$0xff]
    %v927 = vld [vmem:[#allocation11 + $0xf0] sm:$0xff]
    %v928 = vld [vmem:[#allocation11 + $0xf8] sm:$0xff]
    %v929 = vld [vmem:[#allocation11 + $0x100] sm:$0xff]
    %v930 = vld [vmem:[#allocation11 + $0x108] sm:$0xff]
    %v931 = vld [vmem:[#allocation11 + $0x110] sm:$0xff]
    %v932 = vld [vmem:[#allocation11 + $0x118] sm:$0xff]
    %v933 = vld [vmem:[#allocation11 + $0x120] sm:$0xff]
    %v934 = vld [vmem:[#allocation11 + $0x128] sm:$0xff]
    %v935 = vld [vmem:[#allocation11 + $0x130] sm:$0xff]
    %v936 = vld [vmem:[#allocation11 + $0x138] sm:$0xff]
    %v937 = vld [vmem:[#allocation11 + $0x140] sm:$0xff]
    %v938 = vld [vmem:[#allocation11 + $0x148] sm:$0xff]
    %v939 = vld [vmem:[#allocation11 + $0x150] sm:$0xff]
    %v940 = vld [vmem:[#allocation11 + $0x158] sm:$0xff]
    %v941 = vld [vmem:[#allocation11 + $0x160] sm:$0xff]
    %v942 = vld [vmem:[#allocation11 + $0x168] sm:$0xff]
    %v943 = vld [vmem:[#allocation11 + $0x170] sm:$0xff]
    %v944 = vld [vmem:[#allocation11 + $0x178] sm:$0xff]
    %v945 = vld [vmem:[#allocation11 + $0x180] sm:$0xff]
    %v946 = vld [vmem:[#allocation11 + $0x188] sm:$0xff]
    %v947 = vld [vmem:[#allocation11 + $0x190] sm:$0xff]
    %v948 = vld [vmem:[#allocation11 + $0x198] sm:$0xff]
    %v949 = vld [vmem:[#allocation11 + $0x1a0] sm:$0xff]
    %v950 = vld [vmem:[#allocation11 + $0x1a8] sm:$0xff]
    %v951 = vld [vmem:[#allocation11 + $0x1b0] sm:$0xff]
    %v952 = vld [vmem:[#allocation11 + $0x1b8] sm:$0xff]
    %v953 = vld [vmem:[#allocation11 + $0x1c0] sm:$0xff]
    %v954 = vld [vmem:[#allocation11 + $0x1c8] sm:$0xff]
    %v955 = vld [vmem:[#allocation11 + $0x1d0] sm:$0xff]
    %v956 = vld [vmem:[#allocation11 + $0x1d8] sm:$0xff]
    %v957 = vld [vmem:[#allocation11 + $0x1e0] sm:$0xff]
    %v958 = vld [vmem:[#allocation11 + $0x1e8] sm:$0xff]
    %v959 = vld [vmem:[#allocation11 + $0x1f0] sm:$0xff]
    %v960 = vld [vmem:[#allocation11 + $0x1f8] sm:$0xff]
    %v961 = vld [vmem:[#allocation11 + $0x200] sm:$0xff]
    %v962 = vld [vmem:[#allocation11 + $0x208] sm:$0xff]
    %v963 = vld [vmem:[#allocation11 + $0x210] sm:$0xff]
    %v964 = vld [vmem:[#allocation11 + $0x218] sm:$0xff]
    %v965 = vld [vmem:[#allocation11 + $0x220] sm:$0xff]
    %v966 = vld [vmem:[#allocation11 + $0x228] sm:$0xff]
    %v967 = vld [vmem:[#allocation11 + $0x230] sm:$0xff]
    %v968 = vld [vmem:[#allocation11 + $0x238] sm:$0xff]
    %v969 = vld [vmem:[#allocation11 + $0x240] sm:$0xff]
    %v970 = vld [vmem:[#allocation11 + $0x248] sm:$0xff]
    %v971 = vld [vmem:[#allocation11 + $0x250] sm:$0xff]
    %v972 = vld [vmem:[#allocation11 + $0x258] sm:$0xff]
    %v973 = vld [vmem:[#allocation11 + $0x260] sm:$0xff]
    %v974 = vld [vmem:[#allocation11 + $0x268] sm:$0xff]
    %v975 = vld [vmem:[#allocation11 + $0x270] sm:$0xff]
    %v976 = vld [vmem:[#allocation11 + $0x278] sm:$0xff]
    %v977 = vld [vmem:[#allocation11 + $0x280] sm:$0xff]
    %v978 = vld [vmem:[#allocation11 + $0x288] sm:$0xff]
    %v979 = vld [vmem:[#allocation11 + $0x290] sm:$0xff]
    %v980 = vld [vmem:[#allocation11 + $0x298] sm:$0xff]
    %v981 = vld [vmem:[#allocation11 + $0x2a0] sm:$0xff]
    %v982 = vld [vmem:[#allocation11 + $0x2a8] sm:$0xff]
    %v983 = vld [vmem:[#allocation11 + $0x2b0] sm:$0xff]
    %v984 = vld [vmem:[#allocation11 + $0x2b8] sm:$0xff]
    %v985 = vld [vmem:[#allocation11 + $0x2c0] sm:$0xff]
    %v986 = vld [vmem:[#allocation11 + $0x2c8] sm:$0xff]
    %v987 = vld [vmem:[#allocation11 + $0x2d0] sm:$0xff]
    %v988 = vld [vmem:[#allocation11 + $0x2d8] sm:$0xff]
    %v989 = vld [vmem:[#allocation11 + $0x2e0] sm:$0xff]
    %v990 = vld [vmem:[#allocation11 + $0x2e8] sm:$0xff]
    %v991 = vld [vmem:[#allocation11 + $0x2f0] sm:$0xff]
    %v992 = vld [vmem:[#allocation11 + $0x2f8] sm:$0xff]
    %v993 = vld [vmem:[#allocation11 + $0x300] sm:$0xff]
    %v994 = vld [vmem:[#allocation11 + $0x308] sm:$0xff]
    %v995 = vld [vmem:[#allocation11 + $0x310] sm:$0xff]
    %v996 = vld [vmem:[#allocation11 + $0x318] sm:$0xff]
    %v997 = vld [vmem:[#allocation11 + $0x320] sm:$0xff]
    %v998 = vld [vmem:[#allocation11 + $0x328] sm:$0xff]
    %v999 = vld [vmem:[#allocation11 + $0x330] sm:$0xff]
    %v1000 = vld [vmem:[#allocation11 + $0x338] sm:$0xff]
    %v1001 = vld [vmem:[#allocation11 + $0x340] sm:$0xff]
    %v1002 = vld [vmem:[#allocation11 + $0x348] sm:$0xff]
    %v1003 = vld [vmem:[#allocation11 + $0x350] sm:$0xff]
    %v1004 = vld [vmem:[#allocation11 + $0x358] sm:$0xff]
    %v1005 = vld [vmem:[#allocation11 + $0x360] sm:$0xff]
    %v1006 = vld [vmem:[#allocation11 + $0x368] sm:$0xff]
    %v1007 = vld [vmem:[#allocation11 + $0x370] sm:$0xff]
    %v1008 = vld [vmem:[#allocation11 + $0x378] sm:$0xff]
    %v1009 = vld [vmem:[#allocation11 + $0x380] sm:$0xff]
    %v1010 = vld [vmem:[#allocation11 + $0x388] sm:$0xff]
    %v1011 = vld [vmem:[#allocation11 + $0x390] sm:$0xff]
    %v1012 = vld [vmem:[#allocation11 + $0x398] sm:$0xff]
    %v1013 = vld [vmem:[#allocation11 + $0x3a0] sm:$0xff]
    %v1014 = vld [vmem:[#allocation11 + $0x3a8] sm:$0xff]
    %v1015 = vld [vmem:[#allocation11 + $0x3b0] sm:$0xff]
    %v1016 = vld [vmem:[#allocation11 + $0x3b8] sm:$0xff]
    %v1017 = vld [vmem:[#allocation11 + $0x3c0] sm:$0xff]
    %v1018 = vld [vmem:[#allocation11 + $0x3c8] sm:$0xff]
    %v1019 = vld [vmem:[#allocation11 + $0x3d0] sm:$0xff]
    %v1020 = vld [vmem:[#allocation11 + $0x3d8] sm:$0xff]
    %v1021 = vld [vmem:[#allocation11 + $0x3e0] sm:$0xff]
    %v1022 = vld [vmem:[#allocation11 + $0x3e8] sm:$0xff]
    %v1023 = vld [vmem:[#allocation11 + $0x3f0] sm:$0xff]
    %v1024 = vld [vmem:[#allocation11 + $0x3f8] sm:$0xff]
    %v1025 = vld [vmem:[%s6] sm:$0x1]
    %1026 = vmatpush.msra.mxu0 %v912
    %1027 = vmatpush.msra.mxu0 %v911
    %1028 = vmatpush.msra.mxu0 %v910
    %1029 = vmatpush.msra.mxu0 %v909
    %1030 = vmatpush.msra.mxu0 %v908
    %1031 = vmatpush.msra.mxu0 %v907
    %1032 = vmatpush.msra.mxu0 %v906
    %1033 = vmatpush.msra.mxu0 %v905
    %1034 = vmatpush.msra.mxu0 %v904
    %1035 = vmatpush.msra.mxu0 %v903
    %1036 = vmatpush.msra.mxu0 %v902
    %1037 = vmatpush.msra.mxu0 %v901
    %1038 = vmatpush.msra.mxu0 %v900
    %1039 = vmatpush.msra.mxu0 %v899
    %1040 = vmatpush.msra.mxu0 %v898
    %1041 = vmatpush.msra.mxu0 %v897
    %1042 = vmatmul.f32.gmra.mxu0 %v889
    %v1043 = vpop.f32.mrf.mxu0
    %v1044 = vadd.f32 %v1025, %v1043
    %1045 = vdwg.mxu0
    %1046 = vmatpush.msra.mxu0 %v928
    %1047 = vmatpush.msra.mxu0 %v927
    %1048 = vmatpush.msra.mxu0 %v926
    %1049 = vmatpush.msra.mxu0 %v925
    %1050 = vmatpush.msra.mxu0 %v924
    %1051 = vmatpush.msra.mxu0 %v923
    %1052 = vmatpush.msra.mxu0 %v922
    %1053 = vmatpush.msra.mxu0 %v921
    %1054 = vmatpush.msra.mxu0 %v920
    %1055 = vmatpush.msra.mxu0 %v919
    %1056 = vmatpush.msra.mxu0 %v918
    %1057 = vmatpush.msra.mxu0 %v917
    %1058 = vmatpush.msra.mxu0 %v916
    %1059 = vmatpush.msra.mxu0 %v915
    %1060 = vmatpush.msra.mxu0 %v914
    %1061 = vmatpush.msra.mxu0 %v913
    %1062 = vmatmul.f32.gmra.mxu0 %v890
    %v1063 = vpop.f32.mrf.mxu0
    %v1064 = vadd.f32 %v1044, %v1063
    %1065 = vdwg.mxu0
    %1066 = vmatpush.msra.mxu0 %v944
    %1067 = vmatpush.msra.mxu0 %v943
    %1068 = vmatpush.msra.mxu0 %v942
    %1069 = vmatpush.msra.mxu0 %v941
    %1070 = vmatpush.msra.mxu0 %v940
    %1071 = vmatpush.msra.mxu0 %v939
    %1072 = vmatpush.msra.mxu0 %v938
    %1073 = vmatpush.msra.mxu0 %v937
    %1074 = vmatpush.msra.mxu0 %v936
    %1075 = vmatpush.msra.mxu0 %v935
    %1076 = vmatpush.msra.mxu0 %v934
    %1077 = vmatpush.msra.mxu0 %v933
    %1078 = vmatpush.msra.mxu0 %v932
    %1079 = vmatpush.msra.mxu0 %v931
    %1080 = vmatpush.msra.mxu0 %v930
    %1081 = vmatpush.msra.mxu0 %v929
    %1082 = vmatmul.f32.gmra.mxu0 %v891
    %v1083 = vpop.f32.mrf.mxu0
    %v1084 = vadd.f32 %v1064, %v1083
    %1085 = vdwg.mxu0
    %1086 = vmatpush.msra.mxu0 %v960
    %1087 = vmatpush.msra.mxu0 %v959
    %1088 = vmatpush.msra.mxu0 %v958
    %1089 = vmatpush.msra.mxu0 %v957
    %1090 = vmatpush.msra.mxu0 %v956
    %1091 = vmatpush.msra.mxu0 %v955
    %1092 = vmatpush.msra.mxu0 %v954
    %1093 = vmatpush.msra.mxu0 %v953
    %1094 = vmatpush.msra.mxu0 %v952
    %1095 = vmatpush.msra.mxu0 %v951
    %1096 = vmatpush.msra.mxu0 %v950
    %1097 = vmatpush.msra.mxu0 %v949
    %1098 = vmatpush.msra.mxu0 %v948
    %1099 = vmatpush.msra.mxu0 %v947
    %1100 = vmatpush.msra.mxu0 %v946
    %1101 = vmatpush.msra.mxu0 %v945
    %1102 = vmatmul.f32.gmra.mxu0 %v892
    %v1103 = vpop.f32.mrf.mxu0
    %v1104 = vadd.f32 %v1084, %v1103
    %1105 = vdwg.mxu0
    %1106 = vmatpush.msra.mxu0 %v976
    %1107 = vmatpush.msra.mxu0 %v975
    %1108 = vmatpush.msra.mxu0 %v974
    %1109 = vmatpush.msra.mxu0 %v973
    %1110 = vmatpush.msra.mxu0 %v972
    %1111 = vmatpush.msra.mxu0 %v971
    %1112 = vmatpush.msra.mxu0 %v970
    %1113 = vmatpush.msra.mxu0 %v969
    %1114 = vmatpush.msra.mxu0 %v968
    %1115 = vmatpush.msra.mxu0 %v967
    %1116 = vmatpush.msra.mxu0 %v966
    %1117 = vmatpush.msra.mxu0 %v965
    %1118 = vmatpush.msra.mxu0 %v964
    %1119 = vmatpush.msra.mxu0 %v963
    %1120 = vmatpush.msra.mxu0 %v962
    %1121 = vmatpush.msra.mxu0 %v961
    %1122 = vmatmul.f32.gmra.mxu0 %v893
    %v1123 = vpop.f32.mrf.mxu0
    %v1124 = vadd.f32 %v1104, %v1123
    %1125 = vdwg.mxu0
    %1126 = vmatpush.msra.mxu0 %v992
    %1127 = vmatpush.msra.mxu0 %v991
    %1128 = vmatpush.msra.mxu0 %v990
    %1129 = vmatpush.msra.mxu0 %v989
    %1130 = vmatpush.msra.mxu0 %v988
    %1131 = vmatpush.msra.mxu0 %v987
    %1132 = vmatpush.msra.mxu0 %v986
    %1133 = vmatpush.msra.mxu0 %v985
    %1134 = vmatpush.msra.mxu0 %v984
    %1135 = vmatpush.msra.mxu0 %v983
    %1136 = vmatpush.msra.mxu0 %v982
    %1137 = vmatpush.msra.mxu0 %v981
    %1138 = vmatpush.msra.mxu0 %v980
    %1139 = vmatpush.msra.mxu0 %v979
    %1140 = vmatpush.msra.mxu0 %v978
    %1141 = vmatpush.msra.mxu0 %v977
    %1142 = vmatmul.f32.gmra.mxu0 %v894
    %v1143 = vpop.f32.mrf.mxu0
    %v1144 = vadd.f32 %v1124, %v1143
    %1145 = vdwg.mxu0
    %1146 = vmatpush.msra.mxu0 %v1008
    %1147 = vmatpush.msra.mxu0 %v1007
    %1148 = vmatpush.msra.mxu0 %v1006
    %1149 = vmatpush.msra.mxu0 %v1005
    %1150 = vmatpush.msra.mxu0 %v1004
    %1151 = vmatpush.msra.mxu0 %v1003
    %1152 = vmatpush.msra.mxu0 %v1002
    %1153 = vmatpush.msra.mxu0 %v1001
    %1154 = vmatpush.msra.mxu0 %v1000
    %1155 = vmatpush.msra.mxu0 %v999
    %1156 = vmatpush.msra.mxu0 %v998
    %1157 = vmatpush.msra.mxu0 %v997
    %1158 = vmatpush.msra.mxu0 %v996
    %1159 = vmatpush.msra.mxu0 %v995
    %1160 = vmatpush.msra.mxu0 %v994
    %1161 = vmatpush.msra.mxu0 %v993
    %1162 = vmatmul.f32.gmra.mxu0 %v895
    %v1163 = vpop.f32.mrf.mxu0
    %v1164 = vadd.f32 %v1144, %v1163
    %1165 = vdwg.mxu0
    %1166 = vmatpush.msra.mxu0 %v1024
    %1167 = vmatpush.msra.mxu0 %v1023
    %1168 = vmatpush.msra.mxu0 %v1022
    %1169 = vmatpush.msra.mxu0 %v1021
    %1170 = vmatpush.msra.mxu0 %v1020
    %1171 = vmatpush.msra.mxu0 %v1019
    %1172 = vmatpush.msra.mxu0 %v1018
    %1173 = vmatpush.msra.mxu0 %v1017
    %1174 = vmatpush.msra.mxu0 %v1016
    %1175 = vmatpush.msra.mxu0 %v1015
    %1176 = vmatpush.msra.mxu0 %v1014
    %1177 = vmatpush.msra.mxu0 %v1013
    %1178 = vmatpush.msra.mxu0 %v1012
    %1179 = vmatpush.msra.mxu0 %v1011
    %1180 = vmatpush.msra.mxu0 %v1010
    %1181 = vmatpush.msra.mxu0 %v1009
    %1182 = vmatmul.f32.gmra.mxu0 %v896
    %v1183 = vpop.f32.mrf.mxu0
    %v1184 = vadd.f32 %v1164, %v1183
    %1185 = vdwg.mxu0
    %1186 = vst [vmem:[#allocation13] sm:$0x1] %v1184
    // Predicated region
    $region54: #{tpu_custom_call.1} parent=1 // pred_check
      _
    $region55: #{tpu_custom_call.1} parent=1 // pred_check_branch
      %1188 = sbr.rel (0) target = $region57
    $region56: #{tpu_custom_call.1} parent=1 // pred_region
      %1190 = vsyncadd [#allocation4], 0
      %s1192 = sshll.u32 [#allocation13], 4
      %s1193 = int_to_ptr.vmem [resolvable:$true] %s1192
      %s1194 = sshll.u32 %s7, 4
      %s1195 = int_to_ptr.hbm [resolvable:$true] %s1194
      %1197 = dma.vmem_to_hbm [thread:$0]  %s1193, 16, %s1195, [#allocation4]
    $region57: #{tpu_custom_call.1} parent=1 // pred_fallthru
      _
    // Predicated region
    $region58: #{tpu_custom_call.1} parent=1 // pred_check
      _
    $region59: #{tpu_custom_call.1} parent=1 // pred_check_branch
      %1199 = sbr.rel (0) target = $region61
    $region60: #{tpu_custom_call.1} parent=1 // pred_region
      %1201 = dma.done [#allocation4], 16
    $region61: #{tpu_custom_call.1} parent=1 // pred_fallthru
      _
    %1202 = vsyncpa [#allocation3], 1
    %1203 = vsyncpa [#allocation6], 1
    %1204 = vsyncpa [#allocation9], 1
    %1205 = vsyncpa [#allocation12], 1
    %1206 = vsyncpa [#allocation4], 1

</llo_original>
